<compile_context>
chip_gen: v6e
topology: v6e:2x2x1
jax: 0.10.0
libtpu: 0.0.40
codegen_flags: <defaults>
</compile_context>

<pallas_src>
import functools
import math

import jax
import jax.numpy as jnp
from jax.experimental import pallas as pl
from jax.experimental.pallas import tpu as pltpu

LANE = 128
MAX_TILE_R = 4096                 # rows per block (multiple of 8)
VMEM_STREAM_BUDGET = 16 << 20     # double-buffered input streams budget
VMEM_LIMIT_BYTES = 32 << 20       # raise v5e's 16 MiB scoped default
SPLIT_MIN_ROWS = 512              # prefer >=2 blocks (v7x megacore) above this
_TINY = 1.1754944e-38             # smallest normal f32: guards log(0)


def _make_kernel(has_mask, tile_r, last_block_rows, num_blocks,
                 omega, theta, eps, alpha):
    """Per-tile kernel. All hyper-params / shapes are Python constants."""
    log_toe = math.log(theta / eps)
    inv_omega = 1.0 / omega
    omega_over_theta = omega / theta
    mask_last_block = (last_block_rows != tile_r)  # Python-static

    def kernel(*refs):
        if has_mask:
            pred_ref, tgt_ref, mask_ref, out_ref = refs
        else:
            pred_ref, tgt_ref, out_ref = refs

        # native-dtype DMA, upcast in-register
        pred = pred_ref[...].astype(jnp.float32)
        tgt = tgt_ref[...].astype(jnp.float32)
        delta = jnp.abs(pred - tgt)
        if has_mask:
            delta = delta * mask_ref[...].astype(jnp.float32)

        e = alpha - pred
        small = delta < theta                      # single predicate, reused

        # Shared exp for both branches:
        #   branch 1: p = (delta/omega)^e = exp(e*log(delta/omega))
        #   branch 2: p = (theta/eps)^e   = exp(e*log(theta/eps))
        # Clamp to TINY so delta==0 keeps pow(0,0)=1 / pow(0,neg)=inf semantics.
        logd = jnp.log(jnp.maximum(delta * inv_omega, _TINY))
        p = jnp.exp(e * jnp.where(small, logd, log_toe))

        # Branch-2 linear term:
        #   A = omega*(1/(1+p))*e*(theta/eps)^(e-1)*(1/eps) = (omega/theta)*e*p/(1+p)
        #   loss2 = A*delta - (theta*A - omega*log(1+p)) = A*(delta-theta) + omega*log(1+p)
        A = (omega_over_theta * e) * p * pl.reciprocal(1.0 + p, approx=True)
        lin = jnp.where(small, 0.0, A * (delta - theta))

        # Shared log: loss1 = omega*log(1+p); loss2 adds the linear term.
        loss = omega * jnp.log(1.0 + p) + lin

        def write(x):
            # aligned (8, 128) partial-sum tile per grid step
            out_ref[...] = x.reshape(tile_r // 8, 8, LANE).sum(axis=0)

        if mask_last_block:
            is_last = pl.program_id(0) == (num_blocks - 1)

            @pl.when(is_last)
            def _():
                # Only the last block can contain garbage rows (window clipped
                # past rows_pad); zero them before reducing.
                row = jax.lax.broadcasted_iota(jnp.int32, (tile_r, LANE), 0)
                write(jnp.where(row < last_block_rows, loss, 0.0))

            @pl.when(jnp.logical_not(is_last))
            def _():
                write(loss)
        else:
            write(loss)

    return kernel


def adaptive_wing_loss(pred, target, mask=None, *,
                       omega=14.0, theta=0.5, eps=1.0, alpha=2.1,
                       max_tile_rows=None):
    """Exact forward semantics of snook.model.loss.AdaptiveWingLoss.

    Every element falls into exactly one of the two branches, so the result is
    the mean over all n elements of the piecewise per-element loss.
    Returns a float32 scalar.
    """
    n = pred.size
    arrays = [pred.reshape(-1), target.reshape(-1)]
    if mask is not None:
        arrays.append(mask.reshape(-1))

    # Minimal pad (zeros) so the flat length is a multiple of 8*128, then view
    # as a lane-dense (rows_pad, 128) slab.  Zero-padded elements contribute 0.
    rows = pl.cdiv(n, LANE)
    rows_pad = ((rows + 7) // 8) * 8
    n_pad = rows_pad * LANE
    if n_pad != n:
        arrays = [jnp.pad(a, (0, n_pad - n)) for a in arrays]
    arrays = [a.reshape(rows_pad, LANE) for a in arrays]

    # Tile sizing: largest row tile whose double-buffered input streams fit the
    # VMEM budget (native dtypes), capped at MAX_TILE_R.
    bytes_per_row_db = 2 * LANE * sum(jnp.dtype(a.dtype).itemsize for a in arrays)
    tile_cap = min(MAX_TILE_R, (VMEM_STREAM_BUDGET // bytes_per_row_db) // 8 * 8)
    if max_tile_rows is not None:
        tile_cap = min(tile_cap, int(max_tile_rows) // 8 * 8)
    tile_cap = max(8, tile_cap)

    tile_r = min(tile_cap, rows_pad)
    # Prefer >= 2 grid blocks when there's enough work so both v7x TensorCores
    # get a share (grid axis is "parallel").
    if rows_pad >= SPLIT_MIN_ROWS and pl.cdiv(rows_pad, tile_r) < 2:
        tile_r = ((pl.cdiv(rows_pad, 2) + 7) // 8) * 8

    num_blocks = pl.cdiv(rows_pad, tile_r)
    last_block_rows = rows_pad - (num_blocks - 1) * tile_r

    tile_spec = pl.BlockSpec((tile_r, LANE), lambda i: (i, 0))
    kernel = _make_kernel(mask is not None, tile_r, last_block_rows, num_blocks,
                          float(omega), float(theta), float(eps), float(alpha))

    partials = pl.pallas_call(
        kernel,
        out_shape=jax.ShapeDtypeStruct((num_blocks * 8, LANE), jnp.float32),
        grid_spec=pltpu.PrefetchScalarGridSpec(
            num_scalar_prefetch=0,
            grid=(num_blocks,),
            in_specs=[tile_spec] * len(arrays),
            out_specs=pl.BlockSpec((8, LANE), lambda i: (i, 0)),
        ),
        compiler_params=pltpu.CompilerParams(
            dimension_semantics=("parallel",),
            vmem_limit_bytes=VMEM_LIMIT_BYTES),
    )(*arrays)

    # Tiny final reduction (num_blocks x 8 x 128 floats) + static-count divide.
    return jnp.sum(partials) / jnp.float32(n)


def _reference(pred, target, mask=None, *,
               omega=14.0, theta=0.5, eps=1.0, alpha=2.1):
    pred = pred.astype(jnp.float32)
    target = target.astype(jnp.float32)
    delta = jnp.abs(pred - target)
    if mask is not None:
        delta = mask.astype(jnp.float32) * delta
    e = alpha - pred
    loss1 = omega * jnp.log(1.0 + (delta / omega) ** e)
    toe = theta / eps
    A = omega * (1.0 / (1.0 + toe ** e)) * e * toe ** (e - 1.0) * (1.0 / eps)
    C = theta * A - omega * jnp.log(1.0 + toe ** e)
    loss2 = A * delta - C
    loss = jnp.where(delta < theta, loss1, loss2)
    return jnp.sum(loss) / loss.size


if __name__ == "__main__":
    key = jax.random.PRNGKey(0)
    k1, k2, k3, k4, k5, k6, k7 = jax.random.split(key, 7)

    # Tolerances: pl.reciprocal(approx=True) adds ~1e-4-level relative error on
    # the branch-2 linear term, so compare at rtol=5e-4.
    RTOL, ATOL = 5e-4, 1e-5

    B, C, H, W = 2, 4, 16, 16
    pred = 0.5 * jax.random.normal(k1, (B, C, H, W), jnp.float32)
    target = jax.random.uniform(k2, (B, C, H, W), jnp.float32)
    mask = (jax.random.uniform(k3, (B, C, H, W)) > 0.3).astype(jnp.float32)

    # 1) no user mask
    out0 = adaptive_wing_loss(pred, target)
    jax.block_until_ready(out0)
    ref0 = _reference(pred, target)
    assert jnp.allclose(out0, ref0, rtol=RTOL, atol=ATOL), (out0, ref0)

    # 2) with user mask
    out1 = adaptive_wing_loss(pred, target, mask)
    jax.block_until_ready(out1)
    ref1 = _reference(pred, target, mask)
    assert jnp.allclose(out1, ref1, rtol=RTOL, atol=ATOL), (out1, ref1)

    # 3) ragged size (exercises minimal zero-padding to the 8x128 slab)
    pred_r = 0.5 * jax.random.normal(k4, (3, 5, 7, 11), jnp.float32)
    target_r = jax.random.uniform(k5, (3, 5, 7, 11), jnp.float32)
    out2 = adaptive_wing_loss(pred_r, target_r)
    jax.block_until_ready(out2)
    ref2 = _reference(pred_r, target_r)
    assert jnp.allclose(out2, ref2, rtol=RTOL, atol=ATOL), (out2, ref2)

    # 4) small tile override (multi-block parallel grid, full last block)
    out3 = adaptive_wing_loss(pred, target, mask, max_tile_rows=8)
    jax.block_until_ready(out3)
    assert jnp.allclose(out3, ref1, rtol=RTOL, atol=ATOL), (out3, ref1)

    # 5) partial last block (rows_pad=24, tile_r=16 -> pl.when-gated row mask)
    pred_p = 0.5 * jax.random.normal(k6, (2, 5, 17, 17), jnp.float32)
    target_p = jax.random.uniform(k7, (2, 5, 17, 17), jnp.float32)
    out4 = adaptive_wing_loss(pred_p, target_p, max_tile_rows=16)
    jax.block_until_ready(out4)
    ref4 = _reference(pred_p, target_p)
    assert jnp.allclose(out4, ref4, rtol=RTOL, atol=ATOL), (out4, ref4)

    print("KERNEL_OK")
</pallas_src>

<mosaic_0001>
module attributes {stable_mosaic.version = 11 : i64} {
  func.func @kernel(%arg0: i32, %arg1: memref<16x128xf32, #tpu.memory_space<vmem>>, %arg2: memref<16x128xf32, #tpu.memory_space<vmem>>, %arg3: memref<8x128xf32, #tpu.memory_space<vmem>>) attributes {dimension_semantics = [#tpu.dimension_semantics<parallel>], iteration_bounds = array<i64: 1>, scalar_prefetch = 0 : i64, scratch_operands = 0 : i64, tpu.core_type = #tpu.core_type<tc>, window_params = [{transform_indices = @transform_0, window_bounds = array<i64: 16, 128>}, {transform_indices = @transform_1, window_bounds = array<i64: 16, 128>}, {transform_indices = @transform_2, window_bounds = array<i64: 8, 128>}]} {
    %c0 = arith.constant 0 : index
    %c0_0 = arith.constant 0 : index
    %0 = vector.load %arg1[%c0, %c0_0] : memref<16x128xf32, #tpu.memory_space<vmem>>, vector<16x128xf32>
    %c0_1 = arith.constant 0 : index
    %c0_2 = arith.constant 0 : index
    %1 = vector.load %arg2[%c0_1, %c0_2] : memref<16x128xf32, #tpu.memory_space<vmem>>, vector<16x128xf32>
    %2 = arith.subf %0, %1 : vector<16x128xf32>
    %3 = math.absf %2 : vector<16x128xf32>
    %cst = arith.constant 2.100000e+00 : f32
    %4 = vector.broadcast %cst : f32 to vector<16x128xf32>
    %5 = arith.subf %4, %0 : vector<16x128xf32>
    %cst_3 = arith.constant 5.000000e-01 : f32
    %6 = vector.broadcast %cst_3 : f32 to vector<16x128xf32>
    %7 = arith.cmpf olt, %3, %6 : vector<16x128xf32>
    %cst_4 = arith.constant 0.0714285746 : f32
    %8 = vector.broadcast %cst_4 : f32 to vector<16x128xf32>
    %9 = arith.mulf %3, %8 : vector<16x128xf32>
    %cst_5 = arith.constant 1.17549435E-38 : f32
    %10 = vector.broadcast %cst_5 : f32 to vector<16x128xf32>
    %11 = arith.maximumf %9, %10 : vector<16x128xf32>
    %12 = math.log %11 : vector<16x128xf32>
    %cst_6 = arith.constant -0.693147182 : f32
    %13 = vector.broadcast %cst_6 : f32 to vector<16x128xf32>
    %14 = arith.select %7, %12, %13 : vector<16x128xi1>, vector<16x128xf32>
    %15 = arith.mulf %5, %14 : vector<16x128xf32>
    %16 = math.exp %15 : vector<16x128xf32>
    %cst_7 = arith.constant 2.800000e+01 : f32
    %17 = vector.broadcast %cst_7 : f32 to vector<16x128xf32>
    %18 = arith.mulf %17, %5 : vector<16x128xf32>
    %19 = arith.mulf %18, %16 : vector<16x128xf32>
    %cst_8 = arith.constant 1.000000e+00 : f32
    %20 = vector.broadcast %cst_8 : f32 to vector<16x128xf32>
    %21 = arith.addf %20, %16 : vector<16x128xf32>
    %22 = tpu.reciprocal %21 {approx = true} : vector<16x128xf32> -> vector<16x128xf32>
    %23 = arith.mulf %19, %22 : vector<16x128xf32>
    %cst_9 = arith.constant 5.000000e-01 : f32
    %24 = vector.broadcast %cst_9 : f32 to vector<16x128xf32>
    %25 = arith.subf %3, %24 : vector<16x128xf32>
    %26 = arith.mulf %23, %25 : vector<16x128xf32>
    %cst_10 = arith.constant 0.000000e+00 : f32
    %27 = vector.broadcast %cst_10 : f32 to vector<16x128xf32>
    %28 = arith.select %7, %27, %26 : vector<16x128xi1>, vector<16x128xf32>
    %cst_11 = arith.constant 1.000000e+00 : f32
    %29 = vector.broadcast %cst_11 : f32 to vector<16x128xf32>
    %30 = arith.addf %29, %16 : vector<16x128xf32>
    %31 = math.log %30 : vector<16x128xf32>
    %cst_12 = arith.constant 1.400000e+01 : f32
    %32 = vector.broadcast %cst_12 : f32 to vector<16x128xf32>
    %33 = arith.mulf %32, %31 : vector<16x128xf32>
    %34 = arith.addf %33, %28 : vector<16x128xf32>
    %35 = vector.shape_cast %34 : vector<16x128xf32> to vector<2x8x128xf32>
    %cst_13 = arith.constant dense<0.000000e+00> : vector<8x128xf32>
    %36 = vector.multi_reduction <add>, %35, %cst_13 [0] : vector<2x8x128xf32> to vector<8x128xf32>
    %c0_14 = arith.constant 0 : index
    %c0_15 = arith.constant 0 : index
    %37 = vector.load %arg3[%c0_14, %c0_15] : memref<8x128xf32, #tpu.memory_space<vmem>>, vector<8x128xf32>
    tpu.vector_store %arg3[%c0_14, %c0_15], %36 {strides = array<i32>} : memref<8x128xf32, #tpu.memory_space<vmem>>, vector<8x128xf32>,
    return
  }
  func.func @transform_0(%arg0: i32) -> (i32, i32) {
    %c0_i32 = arith.constant 0 : i32
    %c0_i32_0 = arith.constant 0 : i32
    return %arg0, %c0_i32 : i32, i32
  }
  func.func @transform_1(%arg0: i32) -> (i32, i32) {
    %c0_i32 = arith.constant 0 : i32
    %c0_i32_0 = arith.constant 0 : i32
    return %arg0, %c0_i32 : i32, i32
  }
  func.func @transform_2(%arg0: i32) -> (i32, i32) {
    %c0_i32 = arith.constant 0 : i32
    %c0_i32_0 = arith.constant 0 : i32
    return %arg0, %c0_i32 : i32, i32
  }
}

</mosaic_0001>

<llo_original>
// kernel: tpu_custom_call.1
$region0: #{tpu_custom_call.1}
  #allocation0 [shape = 'u32[]', space=smem, size = 0x4, offset = 0x4, fixed_abs, tag = 'smem constant byte address 0x4 - core index']
  #allocation1 [shape = 'u32[144,128]{1,0:T(1,128)}', space=vmem, size = 0x12000, scoped, tag = 'internal scratch']
  %s0 = inlined_call_operand.hbm [shape: f32[16,128], index: 0, kind: input, shape index: {}]
  %s1 = inlined_call_operand.hbm [shape: f32[16,128], index: 1, kind: input, shape index: {}]
  %s2 = inlined_call_operand.hbm [shape: f32[8,128], index: 2, kind: output, shape index: {}]
  %s3 = sld [smem:[#allocation0]]
  $region26: #{tpu_custom_call.1} parent=0
    _
  %s5 = ssub.s32 1, %s3
  %s6 = scalar_select 0, %s5, %s3
  $region1: #{tpu_custom_call.1} parent=0
    #allocation2 [shape = 'u8[8192]{0}', space=vmem, size = 0x2000, scoped, tag = 'input window, operand 0, single buffered']
    #allocation3 [shape = 's32[1]{0}', space=sflag, size = 0x4, scoped, tag = 'scoped memory for tpu_custom_call.1']
    #allocation4 [shape = 's32[1]{0}', space=sflag, size = 0x4, scoped, tag = 'scoped memory for tpu_custom_call.1']
    #allocation5 [shape = 'u8[8192]{0}', space=vmem, size = 0x2000, scoped, tag = 'input window, operand 1, single buffered']
    #allocation6 [shape = 's32[1]{0}', space=sflag, size = 0x4, scoped, tag = 'scoped memory for tpu_custom_call.1']
    #allocation7 [shape = 'u8[4096]{0}', space=vmem, size = 0x1000, scoped, tag = 'output window, operand 0, single buffered']
    %7 = vsyncpa [#allocation3], 0
    %8 = vsyncpa [#allocation6], 0
    %9 = vsyncpa [#allocation4], 0
    // Predicated region
    $region2: #{tpu_custom_call.1} parent=1 // pred_check
      _
    $region3: #{tpu_custom_call.1} parent=1 // pred_check_branch
      %11 = sbr.rel (0) target = $region5
    $region4: #{tpu_custom_call.1} parent=1 // pred_region
      %s13 = ssub.s32 256, 256
      %14 = vsyncadd [#allocation3], %s13
      %s15 = sshll.u32 [#allocation2], 4
      %s16 = int_to_ptr.vmem [resolvable:$true] %s15
      %21 = dma.hbm_to_vmem [thread:$0]  %s0, 256, %s16, [#allocation3], 128, 128, 8
    $region5: #{tpu_custom_call.1} parent=1 // pred_fallthru
      _
    // Predicated region
    $region6: #{tpu_custom_call.1} parent=1 // pred_check
      _
    $region7: #{tpu_custom_call.1} parent=1 // pred_check_branch
      %23 = sbr.rel (0) target = $region9
    $region8: #{tpu_custom_call.1} parent=1 // pred_region
      %s25 = ssub.s32 256, 256
      %26 = vsyncadd [#allocation6], %s25
      %s27 = sshll.u32 [#allocation5], 4
      %s28 = int_to_ptr.vmem [resolvable:$true] %s27
      %33 = dma.hbm_to_vmem [thread:$0]  %s1, 256, %s28, [#allocation6], 128, 128, 8
    $region9: #{tpu_custom_call.1} parent=1 // pred_fallthru
      _
    // Predicated region
    $region10: #{tpu_custom_call.1} parent=1 // pred_check
      _
    $region11: #{tpu_custom_call.1} parent=1 // pred_check_branch
      %35 = sbr.rel (0) target = $region13
    $region12: #{tpu_custom_call.1} parent=1 // pred_region
      %36 = dma.done [#allocation3], 256
    $region13: #{tpu_custom_call.1} parent=1 // pred_fallthru
      _
    // Predicated region
    $region14: #{tpu_custom_call.1} parent=1 // pred_check
      _
    $region15: #{tpu_custom_call.1} parent=1 // pred_check_branch
      %38 = sbr.rel (0) target = $region17
    $region16: #{tpu_custom_call.1} parent=1 // pred_region
      %39 = dma.done [#allocation6], 256
    $region17: #{tpu_custom_call.1} parent=1 // pred_fallthru
      _
    %v40 = vld [vmem:[#allocation2] sm:$0xff]
    %v41 = vld [vmem:[#allocation2 + $0x8] sm:$0xff]
    %v42 = vld [vmem:[#allocation5] sm:$0xff]
    %v43 = vld [vmem:[#allocation5 + $0x8] sm:$0xff]
    %v44 = vsub.f32 %v40, %v42
    %v45 = vsub.f32 %v41, %v43
    %v46 = vand.u32 2147483647, %v44
    %v47 = vand.u32 2147483647, %v45
    %v48 = vsub.f32 2.1, %v40
    %v49 = vsub.f32 2.1, %v41
    %vm50 = vcmp.lt.f32.partialorder %v46, 0.5
    %vm51 = vcmp.lt.f32.partialorder %v47, 0.5
    %v52 = vmul.f32 %v46, 0.071428575
    %v53 = vmul.f32 %v47, 0.071428575
    %v54 = vmax.f32 %v52, 1.1754944e-38
    %v55 = vmax.f32 %v53, 1.1754944e-38
    %v56 = vlog2.pop %v54
    %v57 = vmul.f32 %v56, 0.6931472
    %v58 = vlog2.pop %v55
    %v59 = vmul.f32 %v58, 0.6931472
    %v60 = vsel %vm50, %v57, -0.6931472
    %v61 = vsel %vm51, %v59, -0.6931472
    %v62 = vmul.f32 %v48, %v60
    %v63 = vmul.f32 %v49, %v61
    %v64 = vmul.f32 %v62, 1.442695
    %v65 = vpow.pop %v64
    %v66 = vmul.f32 %v63, 1.442695
    %v67 = vpow.pop %v66
    %v68 = vmul.f32 %v48, 28.0
    %v69 = vmul.f32 %v49, 28.0
    %v70 = vmul.f32 %v68, %v65
    %v71 = vmul.f32 %v69, %v67
    %v72 = vadd.f32 %v65, 1.0
    %v73 = vadd.f32 %v67, 1.0
    %v74 = vrcp.pop %v72
    %v75 = vrcp.pop %v73
    %v76 = vmul.f32 %v70, %v74
    %v77 = vmul.f32 %v71, %v75
    %v78 = vsub.f32 %v46, 0.5
    %v79 = vsub.f32 %v47, 0.5
    %v80 = vmul.f32 %v76, %v78
    %v81 = vmul.f32 %v77, %v79
    %v82 = vsel %vm50, 0.0, %v80
    %v83 = vsel %vm51, 0.0, %v81
    %v84 = vlog2.pop %v72
    %v85 = vmul.f32 %v84, 0.6931472
    %v86 = vlog2.pop %v73
    %v87 = vmul.f32 %v86, 0.6931472
    %v88 = vmul.f32 %v85, 14.0
    %v89 = vmul.f32 %v87, 14.0
    %v90 = vadd.f32 %v88, %v82
    %v91 = vadd.f32 %v89, %v83
    %v92 = vadd.f32 %v90, %v91
    %93 = vst [vmem:[#allocation7] sm:$0xff] %v92
    // Predicated region
    $region18: #{tpu_custom_call.1} parent=1 // pred_check
      _
    $region19: #{tpu_custom_call.1} parent=1 // pred_check_branch
      %95 = sbr.rel (0) target = $region21
    $region20: #{tpu_custom_call.1} parent=1 // pred_region
      %s97 = ssub.s32 128, 128
      %98 = vsyncadd [#allocation4], %s97
      %s100 = sshll.u32 [#allocation7], 4
      %s101 = int_to_ptr.vmem [resolvable:$true] %s100
      %103 = dma.vmem_to_hbm [thread:$0]  %s101, 128, %s2, [#allocation4]
    $region21: #{tpu_custom_call.1} parent=1 // pred_fallthru
      _
    // Predicated region
    $region22: #{tpu_custom_call.1} parent=1 // pred_check
      _
    $region23: #{tpu_custom_call.1} parent=1 // pred_check_branch
      %105 = sbr.rel (0) target = $region25
    $region24: #{tpu_custom_call.1} parent=1 // pred_region
      %106 = dma.done [#allocation4], 128
    $region25: #{tpu_custom_call.1} parent=1 // pred_fallthru
      _
    %107 = vsyncpa [#allocation3], 1
    %108 = vsyncpa [#allocation6], 1
    %109 = vsyncpa [#allocation4], 1

</llo_original>
